<compile_context>
chip_gen: v5e
topology: v5e:2x2
jax: 0.10.0
libtpu: 0.0.40
codegen_flags: <defaults>
</compile_context>

<pallas_src>
import functools
import math

import jax
import jax.numpy as jnp
from jax import lax
from jax.experimental import pallas as pl
from jax.experimental.pallas import tpu as pltpu


# ----------------------------------------------------------------------------
# Fused KernelLayer kernel.
#
# grid = (B // block_b, IN // block_k); axis 0 "parallel", axis 1 "arbitrary" (reduction).
#   x_ref   : (block_b, block_k)      f32   -- input tile
#   w_ref   : (out_size, block_k)     f32   -- weight tile (streamed along IN)
#   lt_ref  : (out_size, out_size)    f32   -- lintrans (resident)
#   out_ref : (block_b, out_size)     f32   -- lane-dense output tile
# scratch:
#   cos_acc : (block_b, out_size)     f32   -- running <x, w> accumulator
#   xss_acc : (block_b, 1)            f32   -- running sum(x^2) per row
#   wss_acc : (1, out_size)           f32   -- running sum(w^2) per weight row
# ----------------------------------------------------------------------------
def kernel_layer_kernel(x_ref, w_ref, lt_ref, out_ref,
                        cos_acc, xss_acc, wss_acc, *, alpha):
    k = pl.program_id(1)

    @pl.when(k == 0)
    def _init():
        cos_acc[...] = jnp.zeros_like(cos_acc)
        xss_acc[...] = jnp.zeros_like(xss_acc)
        wss_acc[...] = jnp.zeros_like(wss_acc)

    x = x_ref[...]                                    # (tb, tk) f32
    w = w_ref[...]                                    # (OUT, tk) f32

    # Partial <x, w> on the MXU: bf16 operands, f32 accumulation.  Contraction is on the
    # last (lane) axis of both operands (flash-attention-style NT matmul).
    cos_acc[...] += lax.dot_general(
        x.astype(jnp.bfloat16), w.astype(jnp.bfloat16),
        (((1,), (1,)), ((), ())), preferred_element_type=jnp.float32)

    # Partial sums of squares (f32, accurate) for ||x|| and ||w_row|| (normalize_()).
    # The weight sumsq uses a ones-row matmul so the result lands lane-dense as (1, OUT)
    # with no cross-lane relayout.
    xss_acc[...] += jnp.sum(x * x, axis=-1, keepdims=True)                     # (tb, 1)
    wss_acc[...] += lax.dot_general(
        jnp.ones((1, x.shape[1]), jnp.float32), w * w,
        (((1,), (1,)), ((), ())), preferred_element_type=jnp.float32)          # (1, OUT)

    @pl.when(k == pl.num_programs(1) - 1)
    def _finalize():
        x_norm = jnp.sqrt(xss_acc[...])                                        # (tb, 1)
        inv_x = pl.reciprocal(jnp.maximum(x_norm, 1e-12), approx=True)         # (tb, 1)
        inv_w = pl.reciprocal(jnp.maximum(jnp.sqrt(wss_acc[...]), 1e-12),
                              approx=True)                                     # (1, OUT)
        cos = cos_acc[...] * inv_x * inv_w                                     # (tb, OUT)
        emb = jnp.exp(alpha * (cos - 1.0)) * x_norm                            # kappa * ||x||
        out_ref[...] = jnp.dot(
            emb.astype(jnp.bfloat16), lt_ref[...].astype(jnp.bfloat16),
            preferred_element_type=jnp.float32).astype(out_ref.dtype)


# ----------------------------------------------------------------------------
# Wrapper
# ----------------------------------------------------------------------------
def kernel_layer_forward(x, weight, lintrans, *, alpha,
                         block_b=8, block_k=256,
                         vmem_limit_bytes=64 * 1024 * 1024):
    b, in_size = x.shape
    out_size, in_size_w = weight.shape
    assert in_size_w == in_size
    assert lintrans.shape == (out_size, out_size)

    block_b = min(block_b, b)
    block_k = min(block_k, in_size)
    # Alignment requirements (a production wrapper would zero-pad instead of asserting):
    # lane-dense output (out_size % 128), (8,128)-divisible blocks, exact tiling.
    assert b % block_b == 0 and block_b % 8 == 0
    assert in_size % block_k == 0 and block_k % 128 == 0
    assert out_size % 128 == 0

    grid = (b // block_b, in_size // block_k)

    cost = pl.CostEstimate(
        flops=2 * b * in_size * out_size + 2 * b * out_size * out_size,
        transcendentals=b * out_size,
        bytes_accessed=4 * (x.size + weight.size * grid[0]
                            + lintrans.size + b * out_size),
    )

    return pl.pallas_call(
        functools.partial(kernel_layer_kernel, alpha=float(alpha)),
        out_shape=jax.ShapeDtypeStruct((b, out_size), jnp.float32),
        grid_spec=pltpu.PrefetchScalarGridSpec(
            num_scalar_prefetch=0,
            grid=grid,
            in_specs=[
                pl.BlockSpec((block_b, block_k), lambda i, k: (i, k)),       # x
                pl.BlockSpec((out_size, block_k), lambda i, k: (0, k)),      # W (streamed)
                pl.BlockSpec((out_size, out_size), lambda i, k: (0, 0)),     # lintrans
            ],
            out_specs=pl.BlockSpec((block_b, out_size), lambda i, k: (i, 0)),
            scratch_shapes=[
                pltpu.VMEM((block_b, out_size), jnp.float32),   # cos accumulator
                pltpu.VMEM((block_b, 1), jnp.float32),          # sum(x^2)
                pltpu.VMEM((1, out_size), jnp.float32),         # sum(w^2)
            ],
        ),
        compiler_params=pltpu.CompilerParams(
            dimension_semantics=("parallel", "arbitrary"),
            vmem_limit_bytes=vmem_limit_bytes,
        ),
        cost_estimate=cost,
    )(x, weight, lintrans)


# ----------------------------------------------------------------------------
# Plain-JAX f32 reference (same math) for a sanity check.
# ----------------------------------------------------------------------------
def reference(x, weight, lintrans, alpha):
    wn = weight / jnp.maximum(
        jnp.linalg.norm(weight, axis=-1, keepdims=True), 1e-12)
    norm = jnp.linalg.norm(x, axis=-1, keepdims=True)
    cos = (x @ wn.T) / jnp.maximum(norm, 1e-12)
    emb = jnp.exp(alpha * (cos - 1.0)) * norm
    return emb @ lintrans


if __name__ == "__main__":
    # Small but MXU/lane-aligned shapes consistent with the module:
    #   input  : (B, input_size), output : (B, output_size)
    IN = 512        # input_size
    OUT = 128       # output_size (multiple of 128 -> lane-dense output)
    B = 16          # batch rows (two block_b=8 tiles -> exercises the parallel axis)
    SIGMA = 0.5
    ALPHA = 1.0 / (SIGMA * SIGMA)

    key = jax.random.PRNGKey(0)
    k1, k2 = jax.random.split(key)

    # reset_parameters(): uniform(-std, std); normalize_() is applied inside the kernel.
    std = 1.0 / math.sqrt(IN)
    weight = jax.random.uniform(k1, (OUT, IN), jnp.float32, -std, std)

    # lintrans = kappa(Wn Wn^T)^{-1/2}  (CKN-style: clamp eigvals >= 0, sqrt, +1e-2, invert)
    # TODO(synk): ops.matrix_inverse_sqrt needs a symmetric eigendecomposition, which has
    # no Pallas/TPU-kernel equivalent; computed here in plain JAX as parameter setup.
    wn = weight / jnp.maximum(jnp.linalg.norm(weight, axis=-1, keepdims=True), 1e-12)
    gram = jnp.exp(ALPHA * (wn @ wn.T - 1.0))
    evals, evecs = jnp.linalg.eigh(gram)
    inv_sqrt = 1.0 / (jnp.sqrt(jnp.clip(evals, 0.0, None)) + 1e-2)
    lintrans = (evecs * inv_sqrt[None, :]) @ evecs.T

    x = jax.random.normal(k2, (B, IN), jnp.float32)

    out = kernel_layer_forward(x, weight, lintrans, alpha=ALPHA,
                               block_b=8, block_k=256)
    out = jax.block_until_ready(out)

    ref = reference(x, weight, lintrans, ALPHA)
    assert out.shape == (B, OUT)
    assert bool(jnp.all(jnp.isfinite(out)))
    # Tolerance loosened (vs. a pure-f32 kernel) because the two large dots use bf16
    # MXU operands with f32 accumulation, per the performance review.
    assert bool(jnp.allclose(out, ref, rtol=5e-2, atol=5e-2)), (
        f"max abs diff {float(jnp.max(jnp.abs(out - ref)))}"
    )
    print("KERNEL_OK")
</pallas_src>

<mosaic_0001>
module attributes {stable_mosaic.version = 11 : i64} {
  func.func @kernel_layer_kernel(%arg0: i32, %arg1: i32, %arg2: memref<8x256xf32, #tpu.memory_space<vmem>>, %arg3: memref<128x256xf32, #tpu.memory_space<vmem>>, %arg4: memref<128x128xf32, #tpu.memory_space<vmem>>, %arg5: memref<8x128xf32, #tpu.memory_space<vmem>>, %arg6: memref<8x128xf32, #tpu.memory_space<vmem>>, %arg7: memref<8x1xf32, #tpu.memory_space<vmem>>, %arg8: memref<1x128xf32, #tpu.memory_space<vmem>>) attributes {dimension_semantics = [#tpu.dimension_semantics<parallel>, #tpu.dimension_semantics<arbitrary>], iteration_bounds = array<i64: 2, 2>, scalar_prefetch = 0 : i64, scratch_operands = 3 : i64, tpu.core_type = #tpu.core_type<tc>, window_params = [{transform_indices = @transform_0, window_bounds = array<i64: 8, 256>}, {transform_indices = @transform_1, window_bounds = array<i64: 128, 256>}, {pipeline_mode = #tpu.pipeline_mode<synchronous>, transform_indices = @transform_2, window_bounds = array<i64: 128, 128>}, {transform_indices = @transform_3, window_bounds = array<i64: 8, 128>}]} {
    %c0_i32 = arith.constant 0 : i32
    %0 = arith.cmpi eq, %arg1, %c0_i32 : i32
    %1 = arith.extui %0 : i1 to i32
    %c0_i32_0 = arith.constant 0 : i32
    %2 = arith.cmpi ne, %1, %c0_i32_0 : i32
    scf.if %2 {
      %cst_20 = arith.constant 0.000000e+00 : f32
      %26 = vector.broadcast %cst_20 : f32 to vector<8x128xf32>
      %c0_21 = arith.constant 0 : index
      %c0_22 = arith.constant 0 : index
      %27 = vector.load %arg6[%c0_21, %c0_22] : memref<8x128xf32, #tpu.memory_space<vmem>>, vector<8x128xf32>
      tpu.vector_store %arg6[%c0_21, %c0_22], %26 {strides = array<i32>} : memref<8x128xf32, #tpu.memory_space<vmem>>, vector<8x128xf32>,
      %cst_23 = arith.constant 0.000000e+00 : f32
      %28 = vector.broadcast %cst_23 : f32 to vector<8x1xf32>
      %c0_24 = arith.constant 0 : index
      %c0_25 = arith.constant 0 : index
      %29 = vector.load %arg7[%c0_24, %c0_25] : memref<8x1xf32, #tpu.memory_space<vmem>>, vector<8x1xf32>
      tpu.vector_store %arg7[%c0_24, %c0_25], %28 {strides = array<i32>} : memref<8x1xf32, #tpu.memory_space<vmem>>, vector<8x1xf32>,
      %cst_26 = arith.constant 0.000000e+00 : f32
      %30 = vector.broadcast %cst_26 : f32 to vector<1x128xf32>
      %c0_27 = arith.constant 0 : index
      %c0_28 = arith.constant 0 : index
      %31 = vector.load %arg8[%c0_27, %c0_28] : memref<1x128xf32, #tpu.memory_space<vmem>>, vector<1x128xf32>
      tpu.vector_store %arg8[%c0_27, %c0_28], %30 {strides = array<i32>} : memref<1x128xf32, #tpu.memory_space<vmem>>, vector<1x128xf32>,
    } else {
    }
    %c0 = arith.constant 0 : index
    %c0_1 = arith.constant 0 : index
    %3 = vector.load %arg2[%c0, %c0_1] : memref<8x256xf32, #tpu.memory_space<vmem>>, vector<8x256xf32>
    %c0_2 = arith.constant 0 : index
    %c0_3 = arith.constant 0 : index
    %4 = vector.load %arg3[%c0_2, %c0_3] : memref<128x256xf32, #tpu.memory_space<vmem>>, vector<128x256xf32>
    %c0_4 = arith.constant 0 : index
    %c0_5 = arith.constant 0 : index
    %5 = vector.load %arg6[%c0_4, %c0_5] : memref<8x128xf32, #tpu.memory_space<vmem>>, vector<8x128xf32>
    %6 = arith.truncf %3 : vector<8x256xf32> to vector<8x256xbf16>
    %7 = arith.truncf %4 : vector<128x256xf32> to vector<128x256xbf16>
    %cst = arith.constant dense<0.000000e+00> : vector<8x128xf32>
    %8 = tpu.matmul %6, %7, %cst {dimension_numbers = #tpu.dot_dimension_numbers<[1], [1], [0], [0], [0, 0, 1, 0], [], []>} : vector<8x256xbf16>, vector<128x256xbf16>, vector<8x128xf32> -> vector<8x128xf32>
    %9 = arith.addf %5, %8 : vector<8x128xf32>
    %c0_6 = arith.constant 0 : index
    %c0_7 = arith.constant 0 : index
    %10 = vector.load %arg6[%c0_6, %c0_7] : memref<8x128xf32, #tpu.memory_space<vmem>>, vector<8x128xf32>
    tpu.vector_store %arg6[%c0_6, %c0_7], %9 {strides = array<i32>} : memref<8x128xf32, #tpu.memory_space<vmem>>, vector<8x128xf32>,
    %c0_8 = arith.constant 0 : index
    %c0_9 = arith.constant 0 : index
    %11 = vector.load %arg7[%c0_8, %c0_9] : memref<8x1xf32, #tpu.memory_space<vmem>>, vector<8x1xf32>
    %12 = arith.mulf %3, %3 : vector<8x256xf32>
    %cst_10 = arith.constant dense<0.000000e+00> : vector<8xf32>
    %13 = vector.multi_reduction <add>, %12, %cst_10 [1] : vector<8x256xf32> to vector<8xf32>
    %14 = vector.shape_cast %13 : vector<8xf32> to vector<8x1xf32>
    %15 = arith.addf %11, %14 : vector<8x1xf32>
    %c0_11 = arith.constant 0 : index
    %c0_12 = arith.constant 0 : index
    %16 = vector.load %arg7[%c0_11, %c0_12] : memref<8x1xf32, #tpu.memory_space<vmem>>, vector<8x1xf32>
    tpu.vector_store %arg7[%c0_11, %c0_12], %15 {strides = array<i32>} : memref<8x1xf32, #tpu.memory_space<vmem>>, vector<8x1xf32>,
    %c0_13 = arith.constant 0 : index
    %c0_14 = arith.constant 0 : index
    %17 = vector.load %arg8[%c0_13, %c0_14] : memref<1x128xf32, #tpu.memory_space<vmem>>, vector<1x128xf32>
    %cst_15 = arith.constant 1.000000e+00 : f32
    %18 = vector.broadcast %cst_15 : f32 to vector<1x256xf32>
    %19 = arith.mulf %4, %4 : vector<128x256xf32>
    %cst_16 = arith.constant dense<0.000000e+00> : vector<1x128xf32>
    %20 = tpu.matmul %18, %19, %cst_16 {dimension_numbers = #tpu.dot_dimension_numbers<[1], [1], [0], [0], [0, 0, 1, 0], [], []>} : vector<1x256xf32>, vector<128x256xf32>, vector<1x128xf32> -> vector<1x128xf32>
    %21 = arith.addf %17, %20 : vector<1x128xf32>
    %c0_17 = arith.constant 0 : index
    %c0_18 = arith.constant 0 : index
    %22 = vector.load %arg8[%c0_17, %c0_18] : memref<1x128xf32, #tpu.memory_space<vmem>>, vector<1x128xf32>
    tpu.vector_store %arg8[%c0_17, %c0_18], %21 {strides = array<i32>} : memref<1x128xf32, #tpu.memory_space<vmem>>, vector<1x128xf32>,
    %c1_i32 = arith.constant 1 : i32
    %23 = arith.cmpi eq, %arg1, %c1_i32 : i32
    %24 = arith.extui %23 : i1 to i32
    %c0_i32_19 = arith.constant 0 : i32
    %25 = arith.cmpi ne, %24, %c0_i32_19 : i32
    scf.if %25 {
      %c0_20 = arith.constant 0 : index
      %c0_21 = arith.constant 0 : index
      %26 = vector.load %arg7[%c0_20, %c0_21] : memref<8x1xf32, #tpu.memory_space<vmem>>, vector<8x1xf32>
      %27 = math.sqrt %26 : vector<8x1xf32>
      %cst_22 = arith.constant 9.99999996E-13 : f32
      %28 = vector.broadcast %cst_22 : f32 to vector<8x1xf32>
      %29 = arith.maximumf %27, %28 : vector<8x1xf32>
      %30 = tpu.reciprocal %29 {approx = true} : vector<8x1xf32> -> vector<8x1xf32>
      %c0_23 = arith.constant 0 : index
      %c0_24 = arith.constant 0 : index
      %31 = vector.load %arg8[%c0_23, %c0_24] : memref<1x128xf32, #tpu.memory_space<vmem>>, vector<1x128xf32>
      %32 = math.sqrt %31 : vector<1x128xf32>
      %cst_25 = arith.constant 9.99999996E-13 : f32
      %33 = vector.broadcast %cst_25 : f32 to vector<1x128xf32>
      %34 = arith.maximumf %32, %33 : vector<1x128xf32>
      %35 = tpu.reciprocal %34 {approx = true} : vector<1x128xf32> -> vector<1x128xf32>
      %c0_26 = arith.constant 0 : index
      %c0_27 = arith.constant 0 : index
      %36 = vector.load %arg6[%c0_26, %c0_27] : memref<8x128xf32, #tpu.memory_space<vmem>>, vector<8x128xf32>
      %37 = vector.broadcast %30 : vector<8x1xf32> to vector<8x128xf32>
      %38 = arith.mulf %36, %37 : vector<8x128xf32>
      %39 = vector.broadcast %35 : vector<1x128xf32> to vector<8x128xf32>
      %40 = arith.mulf %38, %39 : vector<8x128xf32>
      %cst_28 = arith.constant 1.000000e+00 : f32
      %41 = vector.broadcast %cst_28 : f32 to vector<8x128xf32>
      %42 = arith.subf %40, %41 : vector<8x128xf32>
      %cst_29 = arith.constant 4.000000e+00 : f32
      %43 = vector.broadcast %cst_29 : f32 to vector<8x128xf32>
      %44 = arith.mulf %43, %42 : vector<8x128xf32>
      %45 = math.exp %44 : vector<8x128xf32>
      %46 = vector.broadcast %27 : vector<8x1xf32> to vector<8x128xf32>
      %47 = arith.mulf %45, %46 : vector<8x128xf32>
      %48 = arith.truncf %47 : vector<8x128xf32> to vector<8x128xbf16>
      %c0_30 = arith.constant 0 : index
      %c0_31 = arith.constant 0 : index
      %49 = vector.load %arg4[%c0_30, %c0_31] : memref<128x128xf32, #tpu.memory_space<vmem>>, vector<128x128xf32>
      %50 = arith.truncf %49 : vector<128x128xf32> to vector<128x128xbf16>
      %cst_32 = arith.constant dense<0.000000e+00> : vector<8x128xf32>
      %51 = tpu.matmul %48, %50, %cst_32 {dimension_numbers = #tpu.dot_dimension_numbers<[1], [0], [0], [1], [0, 0, 1, 1], [], []>} : vector<8x128xbf16>, vector<128x128xbf16>, vector<8x128xf32> -> vector<8x128xf32>
      %c0_33 = arith.constant 0 : index
      %c0_34 = arith.constant 0 : index
      %52 = vector.load %arg5[%c0_33, %c0_34] : memref<8x128xf32, #tpu.memory_space<vmem>>, vector<8x128xf32>
      tpu.vector_store %arg5[%c0_33, %c0_34], %51 {strides = array<i32>} : memref<8x128xf32, #tpu.memory_space<vmem>>, vector<8x128xf32>,
    } else {
    }
    return
  }
  func.func @transform_0(%arg0: i32, %arg1: i32) -> (i32, i32) {
    %c0_i32 = arith.constant 0 : i32
    return %arg0, %arg1 : i32, i32
  }
  func.func @transform_1(%arg0: i32, %arg1: i32) -> (i32, i32) {
    %c0_i32 = arith.constant 0 : i32
    %c0_i32_0 = arith.constant 0 : i32
    return %c0_i32, %arg1 : i32, i32
  }
  func.func @transform_2(%arg0: i32, %arg1: i32) -> (i32, i32) {
    %c0_i32 = arith.constant 0 : i32
    %c0_i32_0 = arith.constant 0 : i32
    %c0_i32_1 = arith.constant 0 : i32
    return %c0_i32, %c0_i32_0 : i32, i32
  }
  func.func @transform_3(%arg0: i32, %arg1: i32) -> (i32, i32) {
    %c0_i32 = arith.constant 0 : i32
    %c0_i32_0 = arith.constant 0 : i32
    return %arg0, %c0_i32 : i32, i32
  }
}

</mosaic_0001>

<llo_original>
// kernel: tpu_custom_call.1
$region0: #{tpu_custom_call.1}
  #allocation0 [shape = 'u32[]', space=smem, size = 0x4, offset = 0x4, fixed_abs, tag = 'smem constant byte address 0x4 - core index']
  #allocation1 [shape = 'u32[72,128]{1,0:T(1,128)}', space=vmem, size = 0x9000, scoped, tag = 'internal scratch']
  #allocation2 [shape = 'f32[8,128]{1,0:T(8,128)}', space=vmem, size = 0x1000, scoped, tag = 'scratch operand']
  #allocation3 [shape = 'f32[8,1]{1,0:T(8,128)}', space=vmem, size = 0x1000, scoped, tag = 'scratch operand']
  #allocation4 [shape = 'f32[1,128]{1,0:T(1,128)}', space=vmem, size = 0x200, scoped, tag = 'scratch operand']
  %s0 = inlined_call_operand.hbm [shape: f32[16,512], index: 0, kind: input, shape index: {}]
  %s1 = inlined_call_operand.hbm [shape: f32[128,512], index: 1, kind: input, shape index: {}]
  %s2 = inlined_call_operand.hbm [shape: f32[128,128], index: 2, kind: input, shape index: {}]
  %s3 = inlined_call_operand.hbm [shape: f32[16,128], index: 3, kind: output, shape index: {}]
  %s4 = sld [smem:[#allocation0]]
  $region65: #{tpu_custom_call.1} parent=0
    _
  %s6 = ssub.s32 1, %s4
  %s7 = scalar_select 0, %s6, %s4
  $region1: #{tpu_custom_call.1} parent=0
    #allocation5 [shape = 'u8[16384]{0}', space=vmem, size = 0x4000, scoped, tag = 'input window, operand 0']
    #allocation6 [shape = 's32[2]{0}', space=sflag, size = 0x8, scoped, tag = 'scoped memory for tpu_custom_call.1']
    #allocation7 [shape = 's32[2]{0}', space=sflag, size = 0x8, scoped, tag = 'scoped memory for tpu_custom_call.1']
    #allocation8 [shape = 'u8[262144]{0}', space=vmem, size = 0x40000, scoped, tag = 'input window, operand 1']
    #allocation9 [shape = 's32[2]{0}', space=sflag, size = 0x8, scoped, tag = 'scoped memory for tpu_custom_call.1']
    #allocation10 [shape = 'u8[65536]{0}', space=vmem, size = 0x10000, scoped, tag = 'input window, operand 2, single buffered']
    #allocation11 [shape = 'u8[8192]{0}', space=vmem, size = 0x2000, scoped, tag = 'output window, operand 0']
    %8 = vsyncpa [#allocation6], 0
    %s9 = scalar_lea.sflag [#allocation6], 1
    %10 = vsyncpa %s9, 0
    %11 = vsyncpa [#allocation9], 0
    %s12 = scalar_lea.sflag [#allocation9], 1
    %13 = vsyncpa %s12, 0
    %14 = vsyncpa [#allocation7], 0
    %s15 = scalar_lea.sflag [#allocation7], 1
    %16 = vsyncpa %s15, 0
    loop: start=0, step=1, limit=6
    $region2: #{tpu_custom_call.1} parent=1 // loop_pre_header
      _
    $region3: #{tpu_custom_call.1} parent=1 // loop_header
      %s18 = sphi 0, %s22
      %p19 = scmp.ge.s32.totalorder %s18, 6
      %s25 = sphi 0, %s37
      %s26 = sphi 0, %s33
      %s27 = sphi 0, %s25
      %s28 = sphi 0, %s26
      %s29 = sphi 0, %s27
      %s30 = sphi 0, %s28
      %s42 = sphi 0, %s44
      %s45 = sphi 0, %s42
      %s46 = sphi 0, %s45
      %s62 = sphi 0, %s46
      %s68 = sphi 0, %s70
      %s71 = sphi 0, %s68
      %s72 = sphi 0, %s71
      %s88 = sphi 0, %s72
      %s92 = sphi 0, %s92
      %s94 = sphi 0, %s92
      %s95 = sphi 0, %s94
      %s109 = sphi 0, %s95
      %s115 = sphi 0, %s117
      %s118 = sphi 0, %s115
      %s119 = sphi 0, %s118
      %s135 = sphi 0, %s119
    $region4: #{tpu_custom_call.1} parent=1 // loop_header_branch
      %21 = sbr.rel (%p19) target = $region8
    $region5: #{tpu_custom_call.1} parent=1 // loop_body
      %s23 = ssub.s32 %s18, 1
      %s24 = ssub.s32 %s18, 2
      %s31 = sadd.s32 1, %s26
      %p32 = scmp.ge.s32.totalorder %s31, 2
      %s33 = scalar_select %p32, 0, %s31
      %s34 = sadd.s32 1, %s25
      %s35 = scalar_select %p32, %s34, %s25
      %p36 = scmp.ge.s32.totalorder %s35, 2
      %s37 = scalar_select %p36, 0, %s35
      %s38 = ssub.s32 %s25, %s37
      %s39 = ssub.s32 %s26, %s33
      %s40 = sor.u32 %s38, %s39
      %p41 = scmp.eq.s32.totalorder %s40, 0
      %s43 = sadd.s32 %s42, 1
      %s44 = scalar_select %p41, %s42, %s43
      %p47 = pneg %p41
      %p48 = scmp.eq.s32.totalorder %s18, 3
      %p49 = por %p47, %p48
      %p50 = scmp.ne.s32.totalorder %s42, %s45
      %p51 = scmp.eq.s32.totalorder %s18, 0
      %p52 = por %p50, %p51
      %p53 = scmp.ne.s32.totalorder %s42, %s45
      %p54 = scmp.eq.s32.totalorder %s23, 3
      %p55 = por %p53, %p54
      %p56 = scmp.ne.s32.totalorder %s45, %s46
      %p57 = scmp.eq.s32.totalorder %s23, 0
      %p58 = por %p56, %p57
      %p59 = scmp.ne.s32.totalorder %s45, %s46
      %p60 = scmp.eq.s32.totalorder %s24, 3
      %p61 = por %p59, %p60
      %p63 = scmp.ne.s32.totalorder %s46, %s62
      %p64 = scmp.eq.s32.totalorder %s24, 0
      %p65 = por %p63, %p64
      %s66 = ssub.s32 %s26, %s33
      %p67 = scmp.eq.s32.totalorder %s66, 0
      %s69 = sadd.s32 %s68, 1
      %s70 = scalar_select %p67, %s68, %s69
      %p73 = pneg %p67
      %p74 = scmp.eq.s32.totalorder %s18, 3
      %p75 = por %p73, %p74
      %p76 = scmp.ne.s32.totalorder %s68, %s71
      %p77 = scmp.eq.s32.totalorder %s18, 0
      %p78 = por %p76, %p77
      %p79 = scmp.ne.s32.totalorder %s68, %s71
      %p80 = scmp.eq.s32.totalorder %s23, 3
      %p81 = por %p79, %p80
      %p82 = scmp.ne.s32.totalorder %s71, %s72
      %p83 = scmp.eq.s32.totalorder %s23, 0
      %p84 = por %p82, %p83
      %p85 = scmp.ne.s32.totalorder %s71, %s72
      %p86 = scmp.eq.s32.totalorder %s24, 3
      %p87 = por %p85, %p86
      %p89 = scmp.ne.s32.totalorder %s72, %s88
      %p90 = scmp.eq.s32.totalorder %s24, 0
      %p91 = por %p89, %p90
      %s93 = sadd.s32 %s92, 1
      %p96 = scmp.eq.s32.totalorder %s18, 3
      %p97 = scmp.ne.s32.totalorder %s92, %s94
      %p98 = scmp.eq.s32.totalorder %s18, 0
      %p99 = por %p97, %p98
      %p100 = scmp.ne.s32.totalorder %s92, %s94
      %p101 = scmp.eq.s32.totalorder %s23, 3
      %p102 = por %p100, %p101
      %p103 = scmp.ne.s32.totalorder %s94, %s95
      %p104 = scmp.eq.s32.totalorder %s23, 0
      %p105 = por %p103, %p104
      %p106 = scmp.ne.s32.totalorder %s94, %s95
      %p107 = scmp.eq.s32.totalorder %s24, 3
      %p108 = por %p106, %p107
      %p110 = scmp.ne.s32.totalorder %s95, %s109
      %p111 = scmp.eq.s32.totalorder %s24, 0
      %p112 = por %p110, %p111
      %s113 = ssub.s32 %s25, %s37
      %p114 = scmp.eq.s32.totalorder %s113, 0
      %s116 = sadd.s32 %s115, 1
      %s117 = scalar_select %p114, %s115, %s116
      %p120 = pneg %p114
      %p121 = scmp.eq.s32.totalorder %s18, 3
      %p122 = por %p120, %p121
      %p123 = scmp.ne.s32.totalorder %s115, %s118
      %p124 = scmp.eq.s32.totalorder %s18, 0
      %p125 = por %p123, %p124
      %p126 = scmp.ne.s32.totalorder %s115, %s118
      %p127 = scmp.eq.s32.totalorder %s23, 3
      %p128 = por %p126, %p127
      %p129 = scmp.ne.s32.totalorder %s118, %s119
      %p130 = scmp.eq.s32.totalorder %s23, 0
      %p131 = por %p129, %p130
      %p132 = scmp.ne.s32.totalorder %s118, %s119
      %p133 = scmp.eq.s32.totalorder %s24, 3
      %p134 = por %p132, %p133
      %p136 = scmp.ne.s32.totalorder %s119, %s135
      %p137 = scmp.eq.s32.totalorder %s24, 0
      %p138 = por %p136, %p137
      %p139 = scmp.le.s32.totalorder 1, %s18
      %p140 = scmp.lt.s32.totalorder %s18, 5
      %p141 = pnand %p139, %p140
      %p142 = pneg %p141
      // Predicated region
      $region9: #{tpu_custom_call.1} parent=5 // pred_check
        _
      $region10: #{tpu_custom_call.1} parent=5 // pred_check_branch
        %144 = sbr.rel (%p141) target = $region12
      $region11: #{tpu_custom_call.1} parent=5 // pred_region
        %s145 = ssub.s32 %s18, 1
        // Predicated region
        $region13: #{tpu_custom_call.1} parent=11 // pred_check
          %p146 = pneg %p105
        $region14: #{tpu_custom_call.1} parent=11 // pred_check_branch
          %148 = sbr.rel (%p146) target = $region16
        $region15: #{tpu_custom_call.1} parent=11 // pred_region
          %150 = vsyncadd [#allocation9], 0
          %s151 = sshll.u32 %s2, 4
          %s152 = int_to_ptr.hbm [resolvable:$true] %s151
          %s153 = sshll.u32 [#allocation10], 4
          %s154 = int_to_ptr.vmem [resolvable:$true] %s153
          %159 = dma.hbm_to_vmem [thread:$0]  %s152, 2048, %s154, [#allocation9], 128, 128, 8
        $region16: #{tpu_custom_call.1} parent=11 // pred_fallthru
          _
      $region12: #{tpu_custom_call.1} parent=5 // pred_fallthru
        _
      %p160 = scmp.lt.s32.totalorder %s18, 4
      // Predicated region
      $region17: #{tpu_custom_call.1} parent=5 // pred_check
        %p161 = pneg %p160
      $region18: #{tpu_custom_call.1} parent=5 // pred_check_branch
        %163 = sbr.rel (%p161) target = $region20
      $region19: #{tpu_custom_call.1} parent=5 // pred_region
        // Predicated region
        $region21: #{tpu_custom_call.1} parent=19 // pred_check
          %p164 = pneg %p52
        $region22: #{tpu_custom_call.1} parent=19 // pred_check_branch
          %166 = sbr.rel (%p164) target = $region24
        $region23: #{tpu_custom_call.1} parent=19 // pred_region
          %s167 = sand.u32 %s42, 1
          %s168 = scalar_lea.sflag [#allocation6], %s167
          %s169 = sand.u32 %s42, 1
          %s170 = smul.addr %s169, 16
          %s171 = scalar_lea.vmem [#allocation5], %s170
          %s172 = smul.u32 2, %s26
          %174 = vsyncadd %s168, 0
          %s175 = smul.addr %s25, 4
          %s176 = sadd.s32 %s172, %s175
          %s177 = smul.addr %s176, 8
          %s178 = scalar_lea.hbm %s0, %s177
          %s180 = sshll.u32 %s178, 4
          %s181 = int_to_ptr.hbm [resolvable:$true] %s180
          %s182 = sshll.u32 %s171, 4
          %s183 = int_to_ptr.vmem [resolvable:$true] %s182
          %185 = dma.hbm_to_vmem [thread:$0]  %s181, 256, %s183, %s168
        $region24: #{tpu_custom_call.1} parent=19 // pred_fallthru
          _
        // Predicated region
        $region25: #{tpu_custom_call.1} parent=19 // pred_check
          %p186 = pneg %p78
        $region26: #{tpu_custom_call.1} parent=19 // pred_check_branch
          %188 = sbr.rel (%p186) target = $region28
        $region27: #{tpu_custom_call.1} parent=19 // pred_region
          %s189 = sand.u32 %s18, 1
          %s190 = scalar_lea.sflag [#allocation9], %s189
          %s191 = sand.u32 %s68, 1
          %s192 = smul.addr %s191, 256
          %s193 = scalar_lea.vmem [#allocation8], %s192
          %s194 = smul.u32 2, %s26
          %196 = vsyncadd %s190, 0
          %s197 = smul.addr %s194, 8
          %s198 = scalar_lea.hbm %s1, %s197
          %s199 = sshll.u32 %s198, 4
          %s200 = int_to_ptr.hbm [resolvable:$true] %s199
          %s201 = sshll.u32 %s193, 4
          %s202 = int_to_ptr.vmem [resolvable:$true] %s201
          %207 = dma.hbm_to_vmem [thread:$0]  %s200, 4096, %s202, %s190, 512, 256, 16
        $region28: #{tpu_custom_call.1} parent=19 // pred_fallthru
          _
      $region20: #{tpu_custom_call.1} parent=5 // pred_fallthru
        _
      %p208 = scmp.le.s32.totalorder 1, %s18
      %p209 = scmp.lt.s32.totalorder %s18, 5
      %p210 = pnand %p208, %p209
      %p211 = pneg %p210
      // Predicated region
      $region29: #{tpu_custom_call.1} parent=5 // pred_check
        _
      $region30: #{tpu_custom_call.1} parent=5 // pred_check_branch
        %213 = sbr.rel (%p210) target = $region32
      $region31: #{tpu_custom_call.1} parent=5 // pred_region
        %s214 = ssub.s32 %s18, 1
        %s215 = sand.u32 %s45, 1
        %s216 = scalar_lea.sflag [#allocation6], %s215
        %s217 = sand.u32 %s45, 1
        %s218 = smul.addr %s217, 16
        %s219 = scalar_lea.vmem [#allocation5], %s218
        // Predicated region
        $region33: #{tpu_custom_call.1} parent=31 // pred_check
          %p220 = pneg %p58
        $region34: #{tpu_custom_call.1} parent=31 // pred_check_branch
          %222 = sbr.rel (%p220) target = $region36
        $region35: #{tpu_custom_call.1} parent=31 // pred_region
          %224 = dma.done %s216, 256
        $region36: #{tpu_custom_call.1} parent=31 // pred_fallthru
          _
        %s225 = sand.u32 %s23, 1
        %s226 = scalar_lea.sflag [#allocation9], %s225
        %s227 = sand.u32 %s71, 1
        %s228 = smul.addr %s227, 256
        %s229 = scalar_lea.vmem [#allocation8], %s228
        // Predicated region
        $region37: #{tpu_custom_call.1} parent=31 // pred_check
          %p230 = pneg %p84
        $region38: #{tpu_custom_call.1} parent=31 // pred_check_branch
          %232 = sbr.rel (%p230) target = $region40
        $region39: #{tpu_custom_call.1} parent=31 // pred_region
          %234 = dma.done %s226, 4096
        $region40: #{tpu_custom_call.1} parent=31 // pred_fallthru
          _
        // Predicated region
        $region41: #{tpu_custom_call.1} parent=31 // pred_check
          %p235 = pneg %p105
        $region42: #{tpu_custom_call.1} parent=31 // pred_check_branch
          %237 = sbr.rel (%p235) target = $region44
        $region43: #{tpu_custom_call.1} parent=31 // pred_region
          %239 = dma.done [#allocation9], 2048
        $region44: #{tpu_custom_call.1} parent=31 // pred_fallthru
          _
        %s240 = sand.u32 %s45, 1
        %s241 = scalar_lea.sflag [#allocation6], %s240
        %s242 = sand.u32 %s45, 1
        %s243 = smul.addr %s242, 16
        %s244 = scalar_lea.vmem [#allocation5], %s243
        %p245 = pneg %p58
        %p246 = pneg %p55
        %s247 = sand.u32 %s23, 1
        %s248 = scalar_lea.sflag [#allocation9], %s247
        %s249 = sand.u32 %s71, 1
        %s250 = smul.addr %s249, 256
        %s251 = scalar_lea.vmem [#allocation8], %s250
        %p252 = pneg %p84
        %p253 = pneg %p81
        %p254 = pneg %p105
        %p255 = pneg %p102
        %p256 = pneg %p131
        %p257 = pneg %p128
        %s258 = sand.u32 %s118, 1
        %s259 = scalar_lea.sflag [#allocation7], %s258
        %s260 = sand.u32 %s118, 1
        %s261 = smul.addr %s260, 8
        %s262 = scalar_lea.vmem [#allocation11], %s261
        %s263 = smul.u32 2, %s28
        %s264 = smul.u32 2, %s28
        %p265 = scmp.eq.s32.totalorder %s28, 0
        // Predicated region
        $region45: #{tpu_custom_call.1} parent=31 // pred_check
          %p266 = pneg %p265
        $region46: #{tpu_custom_call.1} parent=31 // pred_check_branch
          %268 = sbr.rel (%p266) target = $region48
        $region47: #{tpu_custom_call.1} parent=31 // pred_region
          %269 = vst [vmem:[#allocation2] sm:$0xff] 0.0
          %vm270 = vcmask 7168
          %271 = vst.msk [vmem:[#allocation3] sm:$0xff] %vm270, 0.0
          %272 = vst [vmem:[#allocation4] sm:$0x1] 0.0
        $region48: #{tpu_custom_call.1} parent=31 // pred_fallthru
          _
        %v273 = vld [vmem:[%s219] sm:$0xff]
        %v274 = vld [vmem:[%s219 + $0x8] sm:$0xff]
        %v275 = vld [vmem:[%s229] sm:$0xff]
        %v276 = vld [vmem:[%s229 + $0x8] sm:$0xff]
        %v277 = vld [vmem:[%s229 + $0x10] sm:$0xff]
        %v278 = vld [vmem:[%s229 + $0x18] sm:$0xff]
        %v279 = vld [vmem:[%s229 + $0x20] sm:$0xff]
        %v280 = vld [vmem:[%s229 + $0x28] sm:$0xff]
        %v281 = vld [vmem:[%s229 + $0x30] sm:$0xff]
        %v282 = vld [vmem:[%s229 + $0x38] sm:$0xff]
        %v283 = vld [vmem:[%s229 + $0x40] sm:$0xff]
        %v284 = vld [vmem:[%s229 + $0x48] sm:$0xff]
        %v285 = vld [vmem:[%s229 + $0x50] sm:$0xff]
        %v286 = vld [vmem:[%s229 + $0x58] sm:$0xff]
        %v287 = vld [vmem:[%s229 + $0x60] sm:$0xff]
        %v288 = vld [vmem:[%s229 + $0x68] sm:$0xff]
        %v289 = vld [vmem:[%s229 + $0x70] sm:$0xff]
        %v290 = vld [vmem:[%s229 + $0x78] sm:$0xff]
        %v291 = vld [vmem:[%s229 + $0x80] sm:$0xff]
        %v292 = vld [vmem:[%s229 + $0x88] sm:$0xff]
        %v293 = vld [vmem:[%s229 + $0x90] sm:$0xff]
        %v294 = vld [vmem:[%s229 + $0x98] sm:$0xff]
        %v295 = vld [vmem:[%s229 + $0xa0] sm:$0xff]
        %v296 = vld [vmem:[%s229 + $0xa8] sm:$0xff]
        %v297 = vld [vmem:[%s229 + $0xb0] sm:$0xff]
        %v298 = vld [vmem:[%s229 + $0xb8] sm:$0xff]
        %v299 = vld [vmem:[%s229 + $0xc0] sm:$0xff]
        %v300 = vld [vmem:[%s229 + $0xc8] sm:$0xff]
        %v301 = vld [vmem:[%s229 + $0xd0] sm:$0xff]
        %v302 = vld [vmem:[%s229 + $0xd8] sm:$0xff]
        %v303 = vld [vmem:[%s229 + $0xe0] sm:$0xff]
        %v304 = vld [vmem:[%s229 + $0xe8] sm:$0xff]
        %v305 = vld [vmem:[%s229 + $0xf0] sm:$0xff]
        %v306 = vld [vmem:[%s229 + $0xf8] sm:$0xff]
        %v307 = vld [vmem:[#allocation2] sm:$0xff]
        %v308 = vpack.c.bf16 %v273, %v273
        %v309 = vpack.c.bf16 %v274, %v274
        %v310 = vpack.c.bf16 %v277, %v275
        %v311 = vpack.c.bf16 %v278, %v276
        %v312 = vpack.c.bf16 %v281, %v279
        %v313 = vpack.c.bf16 %v282, %v280
        %v314 = vpack.c.bf16 %v285, %v283
        %v315 = vpack.c.bf16 %v286, %v284
        %v316 = vpack.c.bf16 %v289, %v287
        %v317 = vpack.c.bf16 %v290, %v288
        %v318 = vpack.c.bf16 %v293, %v291
        %v319 = vpack.c.bf16 %v294, %v292
        %v320 = vpack.c.bf16 %v297, %v295
        %v321 = vpack.c.bf16 %v298, %v296
        %v322 = vpack.c.bf16 %v301, %v299
        %v323 = vpack.c.bf16 %v302, %v300
        %v324 = vpack.c.bf16 %v305, %v303
        %v325 = vpack.c.bf16 %v306, %v304
        %326 = vmatpush.bf16.xpose.msra.mxu0 %v324
        %327 = vmatpush.bf16.xpose.msra.mxu0 %v322
        %328 = vmatpush.bf16.xpose.msra.mxu0 %v320
        %329 = vmatpush.bf16.xpose.msra.mxu0 %v318
        %330 = vmatpush.bf16.xpose.msra.mxu0 %v316
        %331 = vmatpush.bf16.xpose.msra.mxu0 %v314
        %332 = vmatpush.bf16.xpose.msra.mxu0 %v312
        %333 = vmatpush.bf16.xpose.msra.mxu0 %v310
        %334 = vmatmul.bf16.gmra.mxu0 %v308
        %v335 = vpop.f32.mrf.mxu0
        %v336 = vadd.f32 0.0, %v335
        %v337 = vpop.f32.mrf.mxu0
        %338 = vdwg.mxu0
        %339 = vmatpush.bf16.xpose.msra.mxu0 %v325
        %340 = vmatpush.bf16.xpose.msra.mxu0 %v323
        %341 = vmatpush.bf16.xpose.msra.mxu0 %v321
        %342 = vmatpush.bf16.xpose.msra.mxu0 %v319
        %343 = vmatpush.bf16.xpose.msra.mxu0 %v317
        %344 = vmatpush.bf16.xpose.msra.mxu0 %v315
        %345 = vmatpush.bf16.xpose.msra.mxu0 %v313
        %346 = vmatpush.bf16.xpose.msra.mxu0 %v311
        %347 = vmatmul.bf16.gmra.mxu0 %v309
        %v348 = vpop.f32.mrf.mxu0
        %v349 = vadd.f32 %v336, %v348
        %v350 = vpop.f32.mrf.mxu0
        %351 = vdwg.mxu0
        %v352 = vadd.f32 %v307, %v349
        %353 = vst [vmem:[#allocation2] sm:$0xff] %v352
        %v354 = vld [vmem:[#allocation3] sm:$0xff]
        %v355 = vmul.f32 %v273, %v273
        %v356 = vmul.f32 %v274, %v274
        %v357 = vadd.f32 %v355, %v356
        %358 = vadd.xlane.f32.xlu0 %v357
        %v359 = vpop.xlane.xlu0 %358
        %v360 = vadd.f32 %v354, %v359
        %vm361 = vcmask 7168
        %362 = vst.msk [vmem:[#allocation3] sm:$0xff] %vm361, %v360
        %v363 = vld [vmem:[#allocation4] sm:$0x1]
        %v364 = vmul.f32 %v275, %v275
        %v365 = vmul.f32 %v276, %v276
        %v366 = vmul.f32 %v277, %v277
        %v367 = vmul.f32 %v278, %v278
        %v368 = vmul.f32 %v279, %v279
        %v369 = vmul.f32 %v280, %v280
        %v370 = vmul.f32 %v281, %v281
        %v371 = vmul.f32 %v282, %v282
        %v372 = vmul.f32 %v283, %v283
        %v373 = vmul.f32 %v284, %v284
        %v374 = vmul.f32 %v285, %v285
        %v375 = vmul.f32 %v286, %v286
        %v376 = vmul.f32 %v287, %v287
        %v377 = vmul.f32 %v288, %v288
        %v378 = vmul.f32 %v289, %v289
        %v379 = vmul.f32 %v290, %v290
        %v380 = vmul.f32 %v291, %v291
        %v381 = vmul.f32 %v292, %v292
        %v382 = vmul.f32 %v293, %v293
        %v383 = vmul.f32 %v294, %v294
        %v384 = vmul.f32 %v295, %v295
        %v385 = vmul.f32 %v296, %v296
        %v386 = vmul.f32 %v297, %v297
        %v387 = vmul.f32 %v298, %v298
        %v388 = vmul.f32 %v299, %v299
        %v389 = vmul.f32 %v300, %v300
        %v390 = vmul.f32 %v301, %v301
        %v391 = vmul.f32 %v302, %v302
        %v392 = vmul.f32 %v303, %v303
        %v393 = vmul.f32 %v304, %v304
        %v394 = vmul.f32 %v305, %v305
        %v395 = vmul.f32 %v306, %v306
        %396 = vmatpush.xpose.msra.mxu0 %v394
        %397 = vmatpush.xpose.msra.mxu0 %v392
        %398 = vmatpush.xpose.msra.mxu0 %v390
        %399 = vmatpush.xpose.msra.mxu0 %v388
        %400 = vmatpush.xpose.msra.mxu0 %v386
        %401 = vmatpush.xpose.msra.mxu0 %v384
        %402 = vmatpush.xpose.msra.mxu0 %v382
        %403 = vmatpush.xpose.msra.mxu0 %v380
        %404 = vmatpush.xpose.msra.mxu0 %v378
        %405 = vmatpush.xpose.msra.mxu0 %v376
        %406 = vmatpush.xpose.msra.mxu0 %v374
        %407 = vmatpush.xpose.msra.mxu0 %v372
        %408 = vmatpush.xpose.msra.mxu0 %v370
        %409 = vmatpush.xpose.msra.mxu0 %v368
        %410 = vmatpush.xpose.msra.mxu0 %v366
        %411 = vmatpush.xpose.msra.mxu0 %v364
        %412 = vmatmul.f32.gmra.mxu0 1.0
        %v413 = vpop.f32.mrf.mxu0
        %v414 = vadd.f32 0.0, %v413
        %415 = vdwg.mxu0
        %416 = vmatpush.xpose.msra.mxu0 %v395
        %417 = vmatpush.xpose.msra.mxu0 %v393
        %418 = vmatpush.xpose.msra.mxu0 %v391
        %419 = vmatpush.xpose.msra.mxu0 %v389
        %420 = vmatpush.xpose.msra.mxu0 %v387
        %421 = vmatpush.xpose.msra.mxu0 %v385
        %422 = vmatpush.xpose.msra.mxu0 %v383
        %423 = vmatpush.xpose.msra.mxu0 %v381
        %424 = vmatpush.xpose.msra.mxu0 %v379
        %425 = vmatpush.xpose.msra.mxu0 %v377
        %426 = vmatpush.xpose.msra.mxu0 %v375
        %427 = vmatpush.xpose.msra.mxu0 %v373
        %428 = vmatpush.xpose.msra.mxu0 %v371
        %429 = vmatpush.xpose.msra.mxu0 %v369
        %430 = vmatpush.xpose.msra.mxu0 %v367
        %431 = vmatpush.xpose.msra.mxu0 %v365
        %432 = vmatmul.f32.gmra.mxu0 1.0
        %v433 = vpop.f32.mrf.mxu0
        %v434 = vadd.f32 %v414, %v433
        %435 = vdwg.mxu0
        %v436 = vadd.f32 %v363, %v434
        %437 = vst [vmem:[#allocation4] sm:$0x1] %v436
        %p438 = scmp.eq.s32.totalorder %s28, 1
        // Predicated region
        $region49: #{tpu_custom_call.1} parent=31 // pred_check
          %p439 = pneg %p438
        $region50: #{tpu_custom_call.1} parent=31 // pred_check_branch
          %441 = sbr.rel (%p439) target = $region52
        $region51: #{tpu_custom_call.1} parent=31 // pred_region
          %v442 = vld [vmem:[#allocation3] sm:$0xff]
          %v443 = vrsqrt.pop %v442
          %v444 = vmul.f32 %v443, %v442
          %v445 = vmul.f32 %v444, %v443
          %v446 = vmul.f32 0.5, %v445
          %v447 = vsub.f32 1.5, %v446
          %v448 = vmul.f32 %v443, %v447
          %v449 = vmul.f32 %v442, %v448
          %vm450 = vcmp.eq.f32.partialorder %v442, inf
          %v451 = vsel %vm450, %v442, %v449
          %vm452 = vcmp.eq.f32.partialorder %v442, 0.0
          %v453 = vand.u32 %v442, 2147483648
          %v454 = vsel %vm452, %v453, %v451
          %v455 = vmax.f32 %v454, 1e-12
          %v456 = vrcp.pop %v455
          %v457 = vld [vmem:[#allocation4] sm:$0x1]
          %v458 = vrsqrt.pop %v457
          %v459 = vmul.f32 %v458, %v457
          %v460 = vmul.f32 %v459, %v458
          %v461 = vmul.f32 0.5, %v460
          %v462 = vsub.f32 1.5, %v461
          %v463 = vmul.f32 %v458, %v462
          %v464 = vmul.f32 %v457, %v463
          %vm465 = vcmp.eq.f32.partialorder %v457, inf
          %v466 = vsel %vm465, %v457, %v464
          %vm467 = vcmp.eq.f32.partialorder %v457, 0.0
          %v468 = vand.u32 %v457, 2147483648
          %v469 = vsel %vm467, %v468, %v466
          %v470 = vmax.f32 %v469, 1e-12
          %v471 = vrcp.pop %v470
          %v472 = vld [vmem:[#allocation2] sm:$0xff]
          %474 = vset.pattern.permute.xlu0 0
          %475 = vperm.xlu0 %474, %v456
          %v476 = vpop.permute.xlu0 %475
          %v478 = vmul.f32 %v472, %v476
          %v480 = vperm.slane %v471, 0
          %v482 = vmul.f32 %v478, %v480
          %v483 = vsub.f32 %v482, 1.0
          %v484 = vmul.f32 %v483, 4.0
          %v485 = vmul.f32 %v484, 1.442695
          %v486 = vpow.pop %v485
          %488 = vset.pattern.permute.xlu0 0
          %489 = vperm.xlu0 %488, %v454
          %v490 = vpop.permute.xlu0 %489
          %v492 = vmul.f32 %v486, %v490
          %v493 = vpack.c.bf16 %v492, %v492
          %v494 = vld [vmem:[#allocation10] sm:$0xff]
          %v495 = vld [vmem:[#allocation10 + $0x8] sm:$0xff]
          %v496 = vld [vmem:[#allocation10 + $0x10] sm:$0xff]
          %v497 = vld [vmem:[#allocation10 + $0x18] sm:$0xff]
          %v498 = vld [vmem:[#allocation10 + $0x20] sm:$0xff]
          %v499 = vld [vmem:[#allocation10 + $0x28] sm:$0xff]
          %v500 = vld [vmem:[#allocation10 + $0x30] sm:$0xff]
          %v501 = vld [vmem:[#allocation10 + $0x38] sm:$0xff]
          %v502 = vld [vmem:[#allocation10 + $0x40] sm:$0xff]
          %v503 = vld [vmem:[#allocation10 + $0x48] sm:$0xff]
          %v504 = vld [vmem:[#allocation10 + $0x50] sm:$0xff]
          %v505 = vld [vmem:[#allocation10 + $0x58] sm:$0xff]
          %v506 = vld [vmem:[#allocation10 + $0x60] sm:$0xff]
          %v507 = vld [vmem:[#allocation10 + $0x68] sm:$0xff]
          %v508 = vld [vmem:[#allocation10 + $0x70] sm:$0xff]
          %v509 = vld [vmem:[#allocation10 + $0x78] sm:$0xff]
          %v510 = vpack.c.bf16 %v495, %v494
          %v511 = vpack.c.bf16 %v497, %v496
          %v512 = vpack.c.bf16 %v499, %v498
          %v513 = vpack.c.bf16 %v501, %v500
          %v514 = vpack.c.bf16 %v503, %v502
          %v515 = vpack.c.bf16 %v505, %v504
          %v516 = vpack.c.bf16 %v507, %v506
          %v517 = vpack.c.bf16 %v509, %v508
          %518 = vmatpush.bf16.msra.mxu0 %v517
          %519 = vmatpush.bf16.msra.mxu0 %v516
          %520 = vmatpush.bf16.msra.mxu0 %v515
          %521 = vmatpush.bf16.msra.mxu0 %v514
          %522 = vmatpush.bf16.msra.mxu0 %v513
          %523 = vmatpush.bf16.msra.mxu0 %v512
          %524 = vmatpush.bf16.msra.mxu0 %v511
          %525 = vmatpush.bf16.msra.mxu0 %v510
          %526 = vmatmul.bf16.gmra.mxu0 %v493
          %v527 = vpop.f32.mrf.mxu0
          %v528 = vadd.f32 0.0, %v527
          %v529 = vpop.f32.mrf.mxu0
          %530 = vdwg.mxu0
          %531 = vst [vmem:[%s262] sm:$0xff] %v528
        $region52: #{tpu_custom_call.1} parent=31 // pred_fallthru
          _
        %s532 = sand.u32 %s118, 1
        %s533 = scalar_lea.sflag [#allocation7], %s532
        %s534 = sand.u32 %s118, 1
        %s535 = smul.addr %s534, 8
        %s536 = scalar_lea.vmem [#allocation11], %s535
        // Predicated region
        $region53: #{tpu_custom_call.1} parent=31 // pred_check
          %p537 = pneg %p128
        $region54: #{tpu_custom_call.1} parent=31 // pred_check_branch
          %539 = sbr.rel (%p537) target = $region56
        $region55: #{tpu_custom_call.1} parent=31 // pred_region
          %541 = vsyncadd %s533, 0
          %s542 = smul.addr %s27, 8
          %s543 = scalar_lea.hbm %s3, %s542
          %s545 = sshll.u32 %s536, 4
          %s546 = int_to_ptr.vmem [resolvable:$true] %s545
          %s547 = sshll.u32 %s543, 4
          %s548 = int_to_ptr.hbm [resolvable:$true] %s547
          %550 = dma.vmem_to_hbm [thread:$0]  %s546, 128, %s548, %s533
        $region56: #{tpu_custom_call.1} parent=31 // pred_fallthru
          _
      $region32: #{tpu_custom_call.1} parent=5 // pred_fallthru
        _
      %p551 = scmp.le.s32.totalorder 2, %s18
      // Predicated region
      $region57: #{tpu_custom_call.1} parent=5 // pred_check
        %p552 = pneg %p551
      $region58: #{tpu_custom_call.1} parent=5 // pred_check_branch
        %554 = sbr.rel (%p552) target = $region60
      $region59: #{tpu_custom_call.1} parent=5 // pred_region
        %s555 = ssub.s32 %s18, 2
        // Predicated region
        $region61: #{tpu_custom_call.1} parent=59 // pred_check
          %p556 = pneg %p134
        $region62: #{tpu_custom_call.1} parent=59 // pred_check_branch
          %558 = sbr.rel (%p556) target = $region64
        $region63: #{tpu_custom_call.1} parent=59 // pred_region
          %s559 = sand.u32 %s119, 1
          %s560 = scalar_lea.sflag [#allocation7], %s559
          %s561 = sand.u32 %s119, 1
          %s562 = smul.addr %s561, 8
          %s563 = scalar_lea.vmem [#allocation11], %s562
          %565 = dma.done %s560, 128
        $region64: #{tpu_custom_call.1} parent=59 // pred_fallthru
          _
      $region60: #{tpu_custom_call.1} parent=5 // pred_fallthru
        _
    $region6: #{tpu_custom_call.1} parent=1 // loop_footer
      %s22 = sadd.s32 1, %s18
    $region7: #{tpu_custom_call.1} parent=1 // loop_footer_branch
      %17 = sbr.rel target = $region3
    $region8: #{tpu_custom_call.1} parent=1 // loop_exit
      _
    %566 = vsyncpa [#allocation6], 1
    %s567 = scalar_lea.sflag [#allocation6], 1
    %568 = vsyncpa %s567, 1
    %569 = vsyncpa [#allocation9], 1
    %s570 = scalar_lea.sflag [#allocation9], 1
    %571 = vsyncpa %s570, 1
    %572 = vsyncpa [#allocation7], 1
    %s573 = scalar_lea.sflag [#allocation7], 1
    %574 = vsyncpa %s573, 1

</llo_original>
